<compile_context>
chip_gen: v7x
topology: tpu7x:2x2x1
jax: 0.10.0
libtpu: 0.0.40
codegen_flags: <defaults>
</compile_context>

<pallas_src>
import functools

import numpy as np
import jax
import jax.numpy as jnp
from jax.experimental import pallas as pl
from jax.experimental.pallas import tpu as pltpu


def _round_up(x, m):
    return -(-x // m) * m


# ----------------------------------------------------------------------------- kernel
def _cond_ebm_kernel(xz_ref, w_ref, o_ref, *, hidden, k_in, out_lanes,
                     r_b_in, r_w1b, r_b1b, r_wo, r_bo):
    n1 = 5 * hidden                       # [s_a | t_a | s_b | t_b | layer-1 pre-act]
    xz = xz_ref[...]                      # (tb, k_in)  -- [z | feat] concatenated

    # One fused MXU push: conditioning (4*hidden lanes) + first-layer pre-activation
    # (hidden lanes).  Block-diagonal weight built host-side; K = in_ch + feat_ch.
    w_in = w_ref[0:k_in, 0:n1]
    b_in = w_ref[r_b_in:r_b_in + 1, 0:n1].astype(jnp.float32)
    y = jnp.dot(xz, w_in, preferred_element_type=jnp.float32) + b_in

    sb = y[:, 0:4 * hidden]               # AdaIN scales/biases (lanes 0 : 4h)
    h = y[:, 4 * hidden:5 * hidden]       # first Linear output (pre-SiLU)

    inv_n = 1.0 / float(hidden)

    def silu_norm_adain(h, scale, bias):
        # SiLU (sigmoid goes to the EUP slot).
        h = h * jax.nn.sigmoid(h)
        # InstanceNorm1d on a 2-D tensor == per-row normalization over the hidden dim.
        # One-pass statistics: mean and E[x^2], var = E[x^2] - mean^2 (biased, eps=1e-5).
        # Reduction covers exactly the real hidden elements (never padded).
        mean = jnp.sum(h, axis=-1, keepdims=True) * inv_n
        ex2 = jnp.sum(h * h, axis=-1, keepdims=True) * inv_n
        var = ex2 - mean * mean
        h = (h - mean) * jax.lax.rsqrt(var + 1e-5)
        # AdaIN
        return scale * h + bias

    # Block A
    h = silu_norm_adain(h, sb[:, 0:hidden], sb[:, hidden:2 * hidden])

    # Block B: Linear + SiLU + InstanceNorm + AdaIN
    w1b = w_ref[r_w1b:r_w1b + hidden, 0:hidden]
    b1b = w_ref[r_b1b:r_b1b + 1, 0:hidden].astype(jnp.float32)
    h = jnp.dot(h.astype(w1b.dtype), w1b, preferred_element_type=jnp.float32) + b1b
    h = silu_norm_adain(h, sb[:, 2 * hidden:3 * hidden], sb[:, 3 * hidden:4 * hidden])

    # Output Linear with the telescopic (reverse-cumsum + linear-interp) matrix folded
    # in host-side; padded only to round_up(n_levels, 8) lanes (minimal HBM writeback).
    wo = w_ref[r_wo:r_wo + hidden, 0:out_lanes]
    bo = w_ref[r_bo:r_bo + 1, 0:out_lanes].astype(jnp.float32)
    out = jnp.dot(h.astype(wo.dtype), wo, preferred_element_type=jnp.float32) + bo
    o_ref[...] = out.astype(o_ref.dtype)


# ------------------------------------------------------------------------ host fusion
def _telescopic_matrix(n_diff, n_levels):
    """Constant (n_diff, n_levels) matrix implementing TelescopicClass' post-process:
    zero-pad, flip/cumsum/flip, then F.interpolate(..., 'linear', align_corners=False)."""
    l_in = n_diff + 1
    # reverse cumsum incl. the appended zero column: out[:, i] = sum_{j >= i} in[:, j]
    cum = np.tril(np.ones((l_in, l_in), np.float64))
    # PyTorch linear interpolation, align_corners=False
    interp = np.zeros((l_in, n_levels), np.float64)
    scale = l_in / n_levels
    for j in range(n_levels):
        src = max((j + 0.5) * scale - 0.5, 0.0)
        i0 = min(int(np.floor(src)), l_in - 1)
        i1 = min(i0 + 1, l_in - 1)
        lam = src - i0
        interp[i0, j] += 1.0 - lam
        interp[i1, j] += lam
    return jnp.asarray(cum[:n_diff, :] @ interp, dtype=jnp.float32)


def fuse_params(p, *, n_levels, dtype=jnp.float32):
    """One-time host-side parameter fusion into a single lane-dense weight slab:
       * block-diagonal first matmul over [z | feat]: cols [0:4h) = conditioning
         (scale_a | bias_a | scale_b | bias_b), cols [4h:5h) = layer-1 pre-activation,
       * telescopic linear map folded into the output Linear, padded to
         round_up(n_levels, 8) lanes,
       * every tensor packed at a 16-sublane-aligned row offset (safe for f32 & bf16).
       Returns (slab, layout)."""
    hidden = p["w1a"].shape[1]
    in_ch = p["w1a"].shape[0]
    f_ch = p["wfa"].shape[0]
    k_in = in_ch + f_ch
    n1 = 5 * hidden
    out_lanes = max(8, _round_up(n_levels, 8))
    cols = max(n1, out_lanes)

    # Block-diagonal first-layer weight over the concatenated [z | feat] input.
    w_in = jnp.zeros((k_in, n1), jnp.float32)
    w_in = w_in.at[in_ch:, 0:2 * hidden].set(p["wfa"])
    w_in = w_in.at[in_ch:, 2 * hidden:4 * hidden].set(p["wfb"])
    w_in = w_in.at[0:in_ch, 4 * hidden:5 * hidden].set(p["w1a"])
    b_in = jnp.concatenate([p["bfa"], p["bfb"], p["b1a"]], axis=1)      # (1, 5h)

    # Fold TelescopicClass into the output Linear.
    n_diff = p["wo"].shape[1]
    m = _telescopic_matrix(n_diff, n_levels)                            # (n_diff, n_levels)
    wo = jnp.pad(p["wo"] @ m, ((0, 0), (0, out_lanes - n_levels)))
    bo = jnp.pad(p["bo"] @ m, ((0, 0), (0, out_lanes - n_levels)))

    A = 16                                                              # sublane alignment
    r_w_in = 0
    r_b_in = _round_up(k_in, A)
    r_w1b = r_b_in + A
    r_b1b = r_w1b + _round_up(hidden, A)
    r_wo = r_b1b + A
    r_bo = r_wo + _round_up(hidden, A)
    rows = _round_up(r_bo + 1, A)

    slab = jnp.zeros((rows, cols), jnp.float32)
    slab = slab.at[r_w_in:r_w_in + k_in, 0:n1].set(w_in)
    slab = slab.at[r_b_in:r_b_in + 1, 0:n1].set(b_in)
    slab = slab.at[r_w1b:r_w1b + hidden, 0:hidden].set(p["w1b"])
    slab = slab.at[r_b1b:r_b1b + 1, 0:hidden].set(p["b1b"])
    slab = slab.at[r_wo:r_wo + hidden, 0:out_lanes].set(wo)
    slab = slab.at[r_bo:r_bo + 1, 0:out_lanes].set(bo)

    layout = dict(hidden=hidden, k_in=k_in, out_lanes=out_lanes,
                  r_b_in=r_b_in, r_w1b=r_w1b, r_b1b=r_b1b, r_wo=r_wo, r_bo=r_bo)
    return slab.astype(dtype), layout


# --------------------------------------------------------------------------- wrapper
def cond_ebm_forward(z, feat, slab, layout, *, n_levels, row_tile=2048):
    """CondEBMWrapper.forward (calc_ebm path).  `slab, layout` come from fuse_params().
    row_tile is the upper bound on rows per grid step; the actual tile is auto-sized so
    the grid has >=2 tiles when the batch allows it (v7x megacore)."""
    B = z.shape[0]
    hidden = layout["hidden"]
    k_in = layout["k_in"]
    out_lanes = layout["out_lanes"]

    # One contiguous per-row input DMA instead of two narrow ones.
    xz = jnp.concatenate([z, feat], axis=1).astype(slab.dtype)
    assert xz.shape[1] == k_in

    # Tile sizing: big tiles (amortize ~600-cycle per-step overhead), but keep >=2 grid
    # tiles whenever possible so dimension_semantics=("parallel",) can shard across both
    # v7x TensorCores.
    b8 = _round_up(max(B, 1), 8)
    tb = max(8, min(_round_up(row_tile, 8), _round_up(pl.cdiv(b8, 2), 8)))
    b_pad = _round_up(B, tb)
    if b_pad != B:
        xz = jnp.pad(xz, ((0, b_pad - B), (0, 0)))
    grid = (b_pad // tb,)

    itemsize = jnp.dtype(slab.dtype).itemsize
    flops = 2 * b_pad * (k_in * 5 * hidden + hidden * hidden + hidden * out_lanes)
    bytes_accessed = (xz.size * itemsize + slab.size * itemsize
                      + b_pad * out_lanes * 4)
    cost = pl.CostEstimate(flops=flops,
                           transcendentals=2 * b_pad * hidden,   # two SiLU sigmoids/row
                           bytes_accessed=bytes_accessed)

    kernel = functools.partial(
        _cond_ebm_kernel, hidden=hidden, k_in=k_in, out_lanes=out_lanes,
        r_b_in=layout["r_b_in"], r_w1b=layout["r_w1b"], r_b1b=layout["r_b1b"],
        r_wo=layout["r_wo"], r_bo=layout["r_bo"])

    out = pl.pallas_call(
        kernel,
        out_shape=jax.ShapeDtypeStruct((b_pad, out_lanes), jnp.float32),
        grid_spec=pltpu.PrefetchScalarGridSpec(
            num_scalar_prefetch=0,
            grid=grid,
            in_specs=[
                pl.BlockSpec((tb, k_in), lambda i: (i, 0)),          # batch-tiled input
                pl.BlockSpec(slab.shape, lambda i: (0, 0)),          # VMEM-resident slab
            ],
            out_specs=pl.BlockSpec((tb, out_lanes), lambda i: (i, 0)),
        ),
        compiler_params=pltpu.CompilerParams(
            dimension_semantics=("parallel",),       # batch rows; both TCs on v7x
            vmem_limit_bytes=32 * 1024 * 1024),
        cost_estimate=cost,
    )(xz, slab)

    return out[:B, :n_levels]


# ------------------------------------------------------------------------ params/ref
def _init_linear(key, fan_in, fan_out):
    """Deterministic PyTorch-style Linear init; weight returned as (in, out)."""
    kw, kb = jax.random.split(key)
    bound = 1.0 / jnp.sqrt(jnp.float32(fan_in))
    w = jax.random.uniform(kw, (fan_in, fan_out), jnp.float32, -bound, bound)
    b = jax.random.uniform(kb, (1, fan_out), jnp.float32, -bound, bound)
    return w, b


def make_params(key, in_channels, out_channels, feat_channels, hidden):
    keys = jax.random.split(key, 5)
    w1a, b1a = _init_linear(keys[0], in_channels, hidden)
    wfa, bfa = _init_linear(keys[1], feat_channels, 2 * hidden)
    w1b, b1b = _init_linear(keys[2], hidden, hidden)
    wfb, bfb = _init_linear(keys[3], feat_channels, 2 * hidden)
    wo, bo = _init_linear(keys[4], hidden, out_channels)
    return dict(w1a=w1a, b1a=b1a, wfa=wfa, bfa=bfa,
                w1b=w1b, b1b=b1b, wfb=wfb, bfb=bfb,
                wo=wo, bo=bo)


def _telescopic_ref(log_p_diff, n_levels):
    """Literal TelescopicClass path (pad, flip/cumsum/flip, linear interpolate)."""
    lp = jnp.concatenate([log_p_diff, jnp.zeros_like(log_p_diff[:, :1])], axis=1)
    lp = jnp.flip(jnp.cumsum(jnp.flip(lp, axis=1), axis=1), axis=1)
    l_in = lp.shape[1]
    j = jnp.arange(n_levels, dtype=jnp.float32)
    src = jnp.maximum((j + 0.5) * (l_in / n_levels) - 0.5, 0.0)
    i0 = jnp.minimum(jnp.floor(src).astype(jnp.int32), l_in - 1)
    i1 = jnp.minimum(i0 + 1, l_in - 1)
    lam = src - i0.astype(jnp.float32)
    return lp[:, i0] * (1.0 - lam) + lp[:, i1] * lam


def _reference(z, feat, p, hidden, n_levels):
    """Pure-JAX reference (unfused) for a correctness check."""
    def block(h, w, b, wf, bf):
        h = h @ w + b
        h = h * jax.nn.sigmoid(h)
        mean = jnp.mean(h, axis=-1, keepdims=True)
        var = jnp.mean((h - mean) ** 2, axis=-1, keepdims=True)
        h = (h - mean) * jax.lax.rsqrt(var + 1e-5)
        sb = feat @ wf + bf
        return sb[:, :hidden] * h + sb[:, hidden:]

    h = block(z, p["w1a"], p["b1a"], p["wfa"], p["bfa"])
    h = block(h, p["w1b"], p["b1b"], p["wfb"], p["bfb"])
    log_p_diff = h @ p["wo"] + p["bo"]
    return _telescopic_ref(log_p_diff, n_levels)


# ------------------------------------------------------------------------------ main
if __name__ == "__main__":
    B, IN_CH, FEAT_CH, HIDDEN = 8, 4, 16, 32
    OUT_DIFF, N_LEVELS = 4, 8            # cond_ebm_net output channels, telescopic levels

    key = jax.random.PRNGKey(0)
    kz, kf, kp, kz2, kf2 = jax.random.split(key, 5)
    z = jax.random.normal(kz, (B, IN_CH), jnp.float32)
    feat = jax.random.normal(kf, (B, FEAT_CH), jnp.float32)

    params = make_params(kp, IN_CH, OUT_DIFF, FEAT_CH, HIDDEN)
    slab, layout = fuse_params(params, n_levels=N_LEVELS)   # one-time host-side fusion

    # Toy-shape check (single tile).
    out = cond_ebm_forward(z, feat, slab, layout, n_levels=N_LEVELS)
    out = jax.block_until_ready(out)
    ref = _reference(z, feat, params, HIDDEN, N_LEVELS)
    assert out.shape == (B, N_LEVELS)
    assert jnp.allclose(out, ref, atol=2e-4, rtol=2e-4), float(jnp.max(jnp.abs(out - ref)))

    # Multi-tile / padded-batch check (grid > 1, exercises the megacore tiling path).
    B2 = 200
    z2 = jax.random.normal(kz2, (B2, IN_CH), jnp.float32)
    feat2 = jax.random.normal(kf2, (B2, FEAT_CH), jnp.float32)
    out2 = cond_ebm_forward(z2, feat2, slab, layout, n_levels=N_LEVELS, row_tile=64)
    out2 = jax.block_until_ready(out2)
    ref2 = _reference(z2, feat2, params, HIDDEN, N_LEVELS)
    assert out2.shape == (B2, N_LEVELS)
    assert jnp.allclose(out2, ref2, atol=2e-4, rtol=2e-4), float(jnp.max(jnp.abs(out2 - ref2)))

    print("KERNEL_OK")
</pallas_src>

<mosaic_0001>
module attributes {stable_mosaic.version = 11 : i64} {
  func.func @_cond_ebm_kernel(%arg0: i32, %arg1: memref<8x20xf32, #tpu.memory_space<vmem>>, %arg2: memref<144x160xf32, #tpu.memory_space<vmem>>, %arg3: memref<8x8xf32, #tpu.memory_space<vmem>>) attributes {dimension_semantics = [#tpu.dimension_semantics<parallel>], iteration_bounds = array<i64: 1>, scalar_prefetch = 0 : i64, scratch_operands = 0 : i64, tpu.core_type = #tpu.core_type<tc>, window_params = [{transform_indices = @transform_0, window_bounds = array<i64: 8, 20>}, {pipeline_mode = #tpu.pipeline_mode<synchronous>, transform_indices = @transform_1, window_bounds = array<i64: 144, 160>}, {transform_indices = @transform_2, window_bounds = array<i64: 8, 8>}]} {
    %c0 = arith.constant 0 : index
    %c0_0 = arith.constant 0 : index
    %0 = vector.load %arg1[%c0, %c0_0] : memref<8x20xf32, #tpu.memory_space<vmem>>, vector<8x20xf32>
    %c0_1 = arith.constant 0 : index
    %c0_2 = arith.constant 0 : index
    %1 = vector.load %arg2[%c0_1, %c0_2] : memref<144x160xf32, #tpu.memory_space<vmem>>, vector<20x160xf32>
    %c32 = arith.constant 32 : index
    %c0_3 = arith.constant 0 : index
    %2 = vector.load %arg2[%c32, %c0_3] : memref<144x160xf32, #tpu.memory_space<vmem>>, vector<1x160xf32>
    %cst = arith.constant dense<0.000000e+00> : vector<8x160xf32>
    %3 = tpu.matmul %0, %1, %cst {dimension_numbers = #tpu.dot_dimension_numbers<[1], [0], [0], [1], [0, 0, 1, 1], [], []>} : vector<8x20xf32>, vector<20x160xf32>, vector<8x160xf32> -> vector<8x160xf32>
    %4 = vector.broadcast %2 : vector<1x160xf32> to vector<8x160xf32>
    %5 = arith.addf %3, %4 : vector<8x160xf32>
    %6 = vector.extract_strided_slice %5 {offsets = [0, 0], sizes = [8, 128], strides = [1, 1]} : vector<8x160xf32> to vector<8x128xf32>
    %7 = vector.extract_strided_slice %5 {offsets = [0, 128], sizes = [8, 32], strides = [1, 1]} : vector<8x160xf32> to vector<8x32xf32>
    %8 = vector.extract_strided_slice %6 {offsets = [0, 0], sizes = [8, 32], strides = [1, 1]} : vector<8x128xf32> to vector<8x32xf32>
    %9 = vector.extract_strided_slice %6 {offsets = [0, 32], sizes = [8, 32], strides = [1, 1]} : vector<8x128xf32> to vector<8x32xf32>
    %10 = arith.negf %7 : vector<8x32xf32>
    %11 = math.exp %10 : vector<8x32xf32>
    %cst_4 = arith.constant 1.000000e+00 : f32
    %12 = vector.broadcast %cst_4 : f32 to vector<8x32xf32>
    %13 = arith.addf %12, %11 : vector<8x32xf32>
    %14 = arith.divf %12, %13 : vector<8x32xf32>
    %15 = arith.mulf %7, %14 : vector<8x32xf32>
    %cst_5 = arith.constant dense<0.000000e+00> : vector<8xf32>
    %16 = vector.multi_reduction <add>, %15, %cst_5 [1] : vector<8x32xf32> to vector<8xf32>
    %17 = vector.shape_cast %16 : vector<8xf32> to vector<8x1xf32>
    %cst_6 = arith.constant 3.125000e-02 : f32
    %18 = vector.broadcast %cst_6 : f32 to vector<8x1xf32>
    %19 = arith.mulf %17, %18 : vector<8x1xf32>
    %20 = arith.mulf %15, %15 : vector<8x32xf32>
    %cst_7 = arith.constant dense<0.000000e+00> : vector<8xf32>
    %21 = vector.multi_reduction <add>, %20, %cst_7 [1] : vector<8x32xf32> to vector<8xf32>
    %22 = vector.shape_cast %21 : vector<8xf32> to vector<8x1xf32>
    %cst_8 = arith.constant 3.125000e-02 : f32
    %23 = vector.broadcast %cst_8 : f32 to vector<8x1xf32>
    %24 = arith.mulf %22, %23 : vector<8x1xf32>
    %25 = arith.mulf %19, %19 : vector<8x1xf32>
    %26 = arith.subf %24, %25 : vector<8x1xf32>
    %27 = vector.broadcast %19 : vector<8x1xf32> to vector<8x32xf32>
    %28 = arith.subf %15, %27 : vector<8x32xf32>
    %cst_9 = arith.constant 9.99999974E-6 : f32
    %29 = vector.broadcast %cst_9 : f32 to vector<8x1xf32>
    %30 = arith.addf %26, %29 : vector<8x1xf32>
    %31 = math.rsqrt %30 : vector<8x1xf32>
    %32 = vector.broadcast %31 : vector<8x1xf32> to vector<8x32xf32>
    %33 = arith.mulf %28, %32 : vector<8x32xf32>
    %34 = arith.mulf %8, %33 : vector<8x32xf32>
    %35 = arith.addf %34, %9 : vector<8x32xf32>
    %c48 = arith.constant 48 : index
    %c0_10 = arith.constant 0 : index
    %36 = vector.load %arg2[%c48, %c0_10] : memref<144x160xf32, #tpu.memory_space<vmem>>, vector<32x32xf32>
    %c80 = arith.constant 80 : index
    %c0_11 = arith.constant 0 : index
    %37 = vector.load %arg2[%c80, %c0_11] : memref<144x160xf32, #tpu.memory_space<vmem>>, vector<1x32xf32>
    %cst_12 = arith.constant dense<0.000000e+00> : vector<8x32xf32>
    %38 = tpu.matmul %35, %36, %cst_12 {dimension_numbers = #tpu.dot_dimension_numbers<[1], [0], [0], [1], [0, 0, 1, 1], [], []>} : vector<8x32xf32>, vector<32x32xf32>, vector<8x32xf32> -> vector<8x32xf32>
    %39 = vector.broadcast %37 : vector<1x32xf32> to vector<8x32xf32>
    %40 = arith.addf %38, %39 : vector<8x32xf32>
    %41 = vector.extract_strided_slice %6 {offsets = [0, 64], sizes = [8, 32], strides = [1, 1]} : vector<8x128xf32> to vector<8x32xf32>
    %42 = vector.extract_strided_slice %6 {offsets = [0, 96], sizes = [8, 32], strides = [1, 1]} : vector<8x128xf32> to vector<8x32xf32>
    %43 = arith.negf %40 : vector<8x32xf32>
    %44 = math.exp %43 : vector<8x32xf32>
    %cst_13 = arith.constant 1.000000e+00 : f32
    %45 = vector.broadcast %cst_13 : f32 to vector<8x32xf32>
    %46 = arith.addf %45, %44 : vector<8x32xf32>
    %47 = arith.divf %45, %46 : vector<8x32xf32>
    %48 = arith.mulf %40, %47 : vector<8x32xf32>
    %cst_14 = arith.constant dense<0.000000e+00> : vector<8xf32>
    %49 = vector.multi_reduction <add>, %48, %cst_14 [1] : vector<8x32xf32> to vector<8xf32>
    %50 = vector.shape_cast %49 : vector<8xf32> to vector<8x1xf32>
    %cst_15 = arith.constant 3.125000e-02 : f32
    %51 = vector.broadcast %cst_15 : f32 to vector<8x1xf32>
    %52 = arith.mulf %50, %51 : vector<8x1xf32>
    %53 = arith.mulf %48, %48 : vector<8x32xf32>
    %cst_16 = arith.constant dense<0.000000e+00> : vector<8xf32>
    %54 = vector.multi_reduction <add>, %53, %cst_16 [1] : vector<8x32xf32> to vector<8xf32>
    %55 = vector.shape_cast %54 : vector<8xf32> to vector<8x1xf32>
    %cst_17 = arith.constant 3.125000e-02 : f32
    %56 = vector.broadcast %cst_17 : f32 to vector<8x1xf32>
    %57 = arith.mulf %55, %56 : vector<8x1xf32>
    %58 = arith.mulf %52, %52 : vector<8x1xf32>
    %59 = arith.subf %57, %58 : vector<8x1xf32>
    %60 = vector.broadcast %52 : vector<8x1xf32> to vector<8x32xf32>
    %61 = arith.subf %48, %60 : vector<8x32xf32>
    %cst_18 = arith.constant 9.99999974E-6 : f32
    %62 = vector.broadcast %cst_18 : f32 to vector<8x1xf32>
    %63 = arith.addf %59, %62 : vector<8x1xf32>
    %64 = math.rsqrt %63 : vector<8x1xf32>
    %65 = vector.broadcast %64 : vector<8x1xf32> to vector<8x32xf32>
    %66 = arith.mulf %61, %65 : vector<8x32xf32>
    %67 = arith.mulf %41, %66 : vector<8x32xf32>
    %68 = arith.addf %67, %42 : vector<8x32xf32>
    %c96 = arith.constant 96 : index
    %c0_19 = arith.constant 0 : index
    %69 = vector.load %arg2[%c96, %c0_19] : memref<144x160xf32, #tpu.memory_space<vmem>>, vector<32x8xf32>
    %c128 = arith.constant 128 : index
    %c0_20 = arith.constant 0 : index
    %70 = vector.load %arg2[%c128, %c0_20] : memref<144x160xf32, #tpu.memory_space<vmem>>, vector<1x8xf32>
    %cst_21 = arith.constant dense<0.000000e+00> : vector<8x8xf32>
    %71 = tpu.matmul %68, %69, %cst_21 {dimension_numbers = #tpu.dot_dimension_numbers<[1], [0], [0], [1], [0, 0, 1, 1], [], []>} : vector<8x32xf32>, vector<32x8xf32>, vector<8x8xf32> -> vector<8x8xf32>
    %72 = vector.broadcast %70 : vector<1x8xf32> to vector<8x8xf32>
    %73 = arith.addf %71, %72 : vector<8x8xf32>
    %c0_22 = arith.constant 0 : index
    %c0_23 = arith.constant 0 : index
    %74 = vector.load %arg3[%c0_22, %c0_23] : memref<8x8xf32, #tpu.memory_space<vmem>>, vector<8x8xf32>
    tpu.vector_store %arg3[%c0_22, %c0_23], %73 {strides = array<i32>} : memref<8x8xf32, #tpu.memory_space<vmem>>, vector<8x8xf32>,
    return
  }
  func.func @transform_0(%arg0: i32) -> (i32, i32) {
    %c0_i32 = arith.constant 0 : i32
    %c0_i32_0 = arith.constant 0 : i32
    return %arg0, %c0_i32 : i32, i32
  }
  func.func @transform_1(%arg0: i32) -> (i32, i32) {
    %c0_i32 = arith.constant 0 : i32
    %c0_i32_0 = arith.constant 0 : i32
    %c0_i32_1 = arith.constant 0 : i32
    return %c0_i32, %c0_i32_0 : i32, i32
  }
  func.func @transform_2(%arg0: i32) -> (i32, i32) {
    %c0_i32 = arith.constant 0 : i32
    %c0_i32_0 = arith.constant 0 : i32
    return %arg0, %c0_i32 : i32, i32
  }
}

</mosaic_0001>

<llo_original>
// kernel: tpu_custom_call.1
$region0: #{tpu_custom_call.1}
  #allocation0 [shape = 'u32[]', space=smem, size = 0x4, offset = 0x4, fixed_abs, tag = 'smem constant byte address 0x4 - core index']
  #allocation1 [shape = 'u32[144,128]{1,0:T(1,128)}', space=vmem, size = 0x12000, scoped, tag = 'internal scratch']
  %s0 = inlined_call_operand.hbm [shape: f32[8,20], index: 0, kind: input, shape index: {}]
  %s1 = inlined_call_operand.hbm [shape: f32[144,160], index: 1, kind: input, shape index: {}]
  %s2 = inlined_call_operand.hbm [shape: f32[8,8], index: 2, kind: output, shape index: {}]
  %s3 = sld [smem:[#allocation0]]
  $region26: #{tpu_custom_call.1} parent=0
    _
  %s5 = ssub.s32 1, %s3
  %s6 = scalar_select 0, %s5, %s3
  $region1: #{tpu_custom_call.1} parent=0
    #allocation2 [shape = 'u8[4096]{0}', space=vmem, size = 0x1000, scoped, tag = 'input window, operand 0, single buffered']
    #allocation3 [shape = 's32[1]{0}', space=sflag, size = 0x4, scoped, tag = 'scoped memory for tpu_custom_call.1']
    #allocation4 [shape = 's32[1]{0}', space=sflag, size = 0x4, scoped, tag = 'scoped memory for tpu_custom_call.1']
    #allocation5 [shape = 'u8[147456]{0}', space=vmem, size = 0x24000, scoped, tag = 'input window, operand 1, single buffered']
    #allocation6 [shape = 's32[1]{0}', space=sflag, size = 0x4, scoped, tag = 'scoped memory for tpu_custom_call.1']
    #allocation7 [shape = 'u8[4096]{0}', space=vmem, size = 0x1000, scoped, tag = 'output window, operand 0, single buffered']
    %7 = vsyncpa [#allocation3], 0
    %8 = vsyncpa [#allocation6], 0
    %9 = vsyncpa [#allocation4], 0
    // Predicated region
    $region2: #{tpu_custom_call.1} parent=1 // pred_check
      _
    $region3: #{tpu_custom_call.1} parent=1 // pred_check_branch
      %11 = sbr.rel (0) target = $region5
    $region4: #{tpu_custom_call.1} parent=1 // pred_region
      %s13 = ssub.s32 128, 128
      %14 = vsyncadd [#allocation3], %s13
      %s16 = sshll.u32 [#allocation2], 4
      %s17 = int_to_ptr.vmem [resolvable:$true] %s16
      %19 = dma.hbm_to_vmem [thread:$0]  %s0, 128, %s17, [#allocation3]
    $region5: #{tpu_custom_call.1} parent=1 // pred_fallthru
      _
    // Predicated region
    $region6: #{tpu_custom_call.1} parent=1 // pred_check
      _
    $region7: #{tpu_custom_call.1} parent=1 // pred_check_branch
      %21 = sbr.rel (0) target = $region9
    $region8: #{tpu_custom_call.1} parent=1 // pred_region
      %s23 = ssub.s32 4608, 4608
      %24 = vsyncadd [#allocation6], %s23
      %s25 = sshll.u32 [#allocation5], 4
      %s26 = int_to_ptr.vmem [resolvable:$true] %s25
      %31 = dma.hbm_to_vmem [thread:$0]  %s1, 4608, %s26, [#allocation6], 256, 256, 16
    $region9: #{tpu_custom_call.1} parent=1 // pred_fallthru
      _
    // Predicated region
    $region10: #{tpu_custom_call.1} parent=1 // pred_check
      _
    $region11: #{tpu_custom_call.1} parent=1 // pred_check_branch
      %33 = sbr.rel (0) target = $region13
    $region12: #{tpu_custom_call.1} parent=1 // pred_region
      %34 = dma.done [#allocation3], 128
    $region13: #{tpu_custom_call.1} parent=1 // pred_fallthru
      _
    // Predicated region
    $region14: #{tpu_custom_call.1} parent=1 // pred_check
      _
    $region15: #{tpu_custom_call.1} parent=1 // pred_check_branch
      %36 = sbr.rel (0) target = $region17
    $region16: #{tpu_custom_call.1} parent=1 // pred_region
      %37 = dma.done [#allocation6], 4608
    $region17: #{tpu_custom_call.1} parent=1 // pred_fallthru
      _
    %v38 = vld [vmem:[#allocation2] sm:$0xff]
    %v39 = vld [vmem:[#allocation5] sm:$0xff]
    %v40 = vld [vmem:[#allocation5 + $0x8] sm:$0xff]
    %v41 = vld [vmem:[#allocation5 + $0x10] sm:$0xff]
    %v42 = vld [vmem:[#allocation5 + $0x18] sm:$0xff]
    %v43 = vld [vmem:[#allocation5 + $0x20] sm:$0xf]
    %v44 = vld [vmem:[#allocation5 + $0x28] sm:$0xf]
    %s45 = scalar_lea.vmem [#allocation5], 64
    %v46 = vld [vmem:[%s45] ss:$8 sm:$0x3]
    %v48 = vlaneseq
    %v49 = vshrl.u32 %v48, 7
    %v50 = vsub.s32 0, %v49
    %v51 = vrot.slane %v46, %v50
    %v52 = vlaneseq
    %v53 = vshrl.u32 %v52, 7
    %v54 = vsub.s32 1, %v53
    %v55 = vrot.slane %v46, %v54
    %vm58 = vcmask 162816
    %v60 = vsel %vm58, %v38, 0
    %vm62 = vcmask 1043456
    %v64 = vsel %vm62, %v43, 0
    %v67 = vsel %vm62, %v44, 0
    %69 = vmatprep.subr.mxu0 %v40
    %70 = vmatpush1.msra.mxu0 %v39
    %71 = vmatprep.subr.mxu0 %v42
    %72 = vmatpush1.msra.mxu0 %v41
    %73 = vmatprep.subr.mxu0 %v67
    %74 = vmatpush1.msra.mxu0 %v64
    %75 = vmatprep.subr.mxu0 0.0
    %76 = vmatpush1.msra.mxu0 0.0
    %77 = vmatprep.subr.mxu0 0.0
    %78 = vmatpush1.msra.mxu0 0.0
    %79 = vmatprep.subr.mxu0 0.0
    %80 = vmatpush1.msra.mxu0 0.0
    %81 = vmatprep.subr.mxu0 0.0
    %82 = vmatpush1.msra.mxu0 0.0
    %83 = vmatprep.subr.mxu0 0.0
    %84 = vmatpush1.msra.mxu0 0.0
    %85 = vmatprep.subr.mxu0 0.0
    %86 = vmatpush1.msra.mxu0 0.0
    %87 = vmatprep.subr.mxu0 0.0
    %88 = vmatpush1.msra.mxu0 0.0
    %89 = vmatprep.subr.mxu0 0.0
    %90 = vmatpush1.msra.mxu0 0.0
    %91 = vmatprep.subr.mxu0 0.0
    %92 = vmatpush1.msra.mxu0 0.0
    %93 = vmatprep.subr.mxu0 0.0
    %94 = vmatpush1.msra.mxu0 0.0
    %95 = vmatprep.subr.mxu0 0.0
    %96 = vmatpush1.msra.mxu0 0.0
    %97 = vmatprep.subr.mxu0 0.0
    %98 = vmatpush1.msra.mxu0 0.0
    %99 = vmatprep.subr.mxu0 0.0
    %100 = vmatpush1.msra.mxu0 0.0
    %101 = vmatprep.subr.mxu0 0.0
    %102 = vmatpush1.msra.mxu0 0.0
    %103 = vmatprep.subr.mxu0 0.0
    %104 = vmatpush1.msra.mxu0 0.0
    %105 = vmatprep.subr.mxu0 0.0
    %106 = vmatpush1.msra.mxu0 0.0
    %107 = vmatprep.subr.mxu0 0.0
    %108 = vmatpush1.msra.mxu0 0.0
    %109 = vmatprep.subr.mxu0 0.0
    %110 = vmatpush1.msra.mxu0 0.0
    %111 = vmatprep.subr.mxu0 0.0
    %112 = vmatpush1.msra.mxu0 0.0
    %113 = vmatprep.subr.mxu0 0.0
    %114 = vmatpush1.msra.mxu0 0.0
    %115 = vmatprep.subr.mxu0 0.0
    %116 = vmatpush1.msra.mxu0 0.0
    %117 = vmatprep.subr.mxu0 0.0
    %118 = vmatpush1.msra.mxu0 0.0
    %119 = vmatprep.subr.mxu0 0.0
    %120 = vmatpush1.msra.mxu0 0.0
    %121 = vmatprep.subr.mxu0 0.0
    %122 = vmatpush1.msra.mxu0 0.0
    %123 = vmatprep.subr.mxu0 0.0
    %124 = vmatpush1.msra.mxu0 0.0
    %125 = vmatprep.subr.mxu0 0.0
    %126 = vmatpush1.msra.mxu0 0.0
    %127 = vmatprep.subr.mxu0 0.0
    %128 = vmatpush1.msra.mxu0 0.0
    %129 = vmatprep.subr.mxu0 0.0
    %130 = vmatpush1.msra.mxu0 0.0
    %131 = vmatprep.subr.mxu0 0.0
    %132 = vmatpush1.msra.mxu0 0.0
    %133 = vmatprep.mubr.f32.mxu0 0.0
    %134 = vmatmul.mubr.f32.gmra.mrb[0].mxu0 %v60
    %v135 = vpop.f32.mrb[0].mxu0
    %v136 = vadd.f32 %v51, %v135
    %v137 = vpop.f32.mrb[0].mxu0
    %v138 = vadd.f32 %v55, %v137
    %139 = vdwg.mxu0
    %v140 = vxor.u32 %v138, 2147483648
    %v141 = vmul.f32 %v140, 1.442695
    %v142 = vpow.pop %v141
    %v143 = vadd.f32 %v142, 1.0
    %v144 = vrcp.pop %v143
    %v145 = vmul.f32 1.0, %v144
    %v146 = vmul.f32 %v138, %v145
    %vm147 = vcmask 261120
    %v148 = vsel %vm147, %v146, 0.0
    %149 = vadd.xlane.f32.xlu0 %v148
    %v150 = vpop.xlane.xlu0 %149
    %v151 = vmul.f32 %v150, 0.03125
    %v152 = vmul.f32 %v146, %v146
    %v153 = vsel %vm147, %v152, 0.0
    %154 = vadd.xlane.f32.xlu0 %v153
    %v155 = vpop.xlane.xlu0 %154
    %v156 = vmul.f32 %v155, 0.03125
    %v157 = vmul.f32 %v151, %v151
    %v158 = vsub.f32 %v156, %v157
    %v159 = vsub.f32 %v146, %v151
    %v160 = vadd.f32 %v158, 1e-05
    %v161 = vrsqrt.pop %v160
    %v162 = vmul.f32 %v159, %v161
    %v163 = vmul.f32 %v136, %v162
    %165 = vrot.lane.b32.xlu0 %v136, 96
    %v166 = vpop.permute.xlu0 %165
    %v168 = vadd.f32 %v163, %v166
    %v169 = vld [vmem:[#allocation5 + $0x60] sm:$0xff]
    %v170 = vld [vmem:[#allocation5 + $0x70] sm:$0xff]
    %v171 = vld [vmem:[#allocation5 + $0x80] sm:$0xff]
    %v172 = vld [vmem:[#allocation5 + $0x90] sm:$0xff]
    %v173 = vld [vmem:[#allocation5 + $0xa0] ss:$0 sm:$0xff]
    %v175 = vsel %vm147, %v168, 0
    %177 = vmatprep.subr.mxu0 0.0
    %178 = vmatpush1.msra.mxu0 %v169
    %179 = vmatprep.subr.mxu0 0.0
    %180 = vmatpush1.msra.mxu0 %v170
    %181 = vmatprep.subr.mxu0 0.0
    %182 = vmatpush1.msra.mxu0 %v171
    %183 = vmatprep.subr.mxu0 0.0
    %184 = vmatpush1.msra.mxu0 %v172
    %185 = vmatprep.subr.mxu0 0.0
    %186 = vmatpush1.msra.mxu0 0.0
    %187 = vmatprep.subr.mxu0 0.0
    %188 = vmatpush1.msra.mxu0 0.0
    %189 = vmatprep.subr.mxu0 0.0
    %190 = vmatpush1.msra.mxu0 0.0
    %191 = vmatprep.subr.mxu0 0.0
    %192 = vmatpush1.msra.mxu0 0.0
    %193 = vmatprep.subr.mxu0 0.0
    %194 = vmatpush1.msra.mxu0 0.0
    %195 = vmatprep.subr.mxu0 0.0
    %196 = vmatpush1.msra.mxu0 0.0
    %197 = vmatprep.subr.mxu0 0.0
    %198 = vmatpush1.msra.mxu0 0.0
    %199 = vmatprep.subr.mxu0 0.0
    %200 = vmatpush1.msra.mxu0 0.0
    %201 = vmatprep.subr.mxu0 0.0
    %202 = vmatpush1.msra.mxu0 0.0
    %203 = vmatprep.subr.mxu0 0.0
    %204 = vmatpush1.msra.mxu0 0.0
    %205 = vmatprep.subr.mxu0 0.0
    %206 = vmatpush1.msra.mxu0 0.0
    %207 = vmatprep.subr.mxu0 0.0
    %208 = vmatpush1.msra.mxu0 0.0
    %209 = vmatprep.subr.mxu0 0.0
    %210 = vmatpush1.msra.mxu0 0.0
    %211 = vmatprep.subr.mxu0 0.0
    %212 = vmatpush1.msra.mxu0 0.0
    %213 = vmatprep.subr.mxu0 0.0
    %214 = vmatpush1.msra.mxu0 0.0
    %215 = vmatprep.subr.mxu0 0.0
    %216 = vmatpush1.msra.mxu0 0.0
    %217 = vmatprep.subr.mxu0 0.0
    %218 = vmatpush1.msra.mxu0 0.0
    %219 = vmatprep.subr.mxu0 0.0
    %220 = vmatpush1.msra.mxu0 0.0
    %221 = vmatprep.subr.mxu0 0.0
    %222 = vmatpush1.msra.mxu0 0.0
    %223 = vmatprep.subr.mxu0 0.0
    %224 = vmatpush1.msra.mxu0 0.0
    %225 = vmatprep.subr.mxu0 0.0
    %226 = vmatpush1.msra.mxu0 0.0
    %227 = vmatprep.subr.mxu0 0.0
    %228 = vmatpush1.msra.mxu0 0.0
    %229 = vmatprep.subr.mxu0 0.0
    %230 = vmatpush1.msra.mxu0 0.0
    %231 = vmatprep.subr.mxu0 0.0
    %232 = vmatpush1.msra.mxu0 0.0
    %233 = vmatprep.subr.mxu0 0.0
    %234 = vmatpush1.msra.mxu0 0.0
    %235 = vmatprep.subr.mxu0 0.0
    %236 = vmatpush1.msra.mxu0 0.0
    %237 = vmatprep.subr.mxu0 0.0
    %238 = vmatpush1.msra.mxu0 0.0
    %239 = vmatprep.subr.mxu0 0.0
    %240 = vmatpush1.msra.mxu0 0.0
    %241 = vmatprep.mubr.f32.mxu0 0.0
    %242 = vmatmul.mubr.f32.gmra.mrb[0].mxu0 %v175
    %v243 = vpop.f32.mrb[0].mxu0
    %v244 = vadd.f32 %v173, %v243
    %v245 = vpop.f32.mrb[0].mxu0
    %246 = vdwg.mxu0
    %v247 = vxor.u32 %v244, 2147483648
    %v248 = vmul.f32 %v247, 1.442695
    %v249 = vpow.pop %v248
    %v250 = vadd.f32 %v249, 1.0
    %v251 = vrcp.pop %v250
    %v252 = vmul.f32 1.0, %v251
    %v253 = vmul.f32 %v244, %v252
    %v254 = vsel %vm147, %v253, 0.0
    %255 = vadd.xlane.f32.xlu0 %v254
    %v256 = vpop.xlane.xlu0 %255
    %v257 = vmul.f32 %v256, 0.03125
    %v258 = vmul.f32 %v253, %v253
    %v259 = vsel %vm147, %v258, 0.0
    %260 = vadd.xlane.f32.xlu0 %v259
    %v261 = vpop.xlane.xlu0 %260
    %v262 = vmul.f32 %v261, 0.03125
    %v263 = vmul.f32 %v257, %v257
    %v264 = vsub.f32 %v262, %v263
    %v265 = vsub.f32 %v253, %v257
    %v266 = vadd.f32 %v264, 1e-05
    %v267 = vrsqrt.pop %v266
    %v268 = vmul.f32 %v265, %v267
    %270 = vrot.lane.b32.xlu0 %v268, 64
    %v271 = vpop.permute.xlu0 %270
    %v273 = vmul.f32 %v136, %v271
    %v274 = vadd.f32 %v273, %v166
    %v275 = vld [vmem:[#allocation5 + $0xc0] sm:$0xff]
    %v276 = vld [vmem:[#allocation5 + $0xd0] sm:$0xff]
    %v277 = vld [vmem:[#allocation5 + $0xe0] sm:$0xff]
    %v278 = vld [vmem:[#allocation5 + $0xf0] sm:$0xff]
    %v279 = vld [vmem:[#allocation5 + $0x100] ss:$0 sm:$0xff]
    %281 = vrot.lane.b32.xlu0 %v274, 64
    %v282 = vpop.permute.xlu0 %281
    %v283 = vsel %vm147, %v282, 0
    %285 = vmatprep.subr.mxu0 0.0
    %286 = vmatpush1.msra.mxu0 %v275
    %287 = vmatprep.subr.mxu0 0.0
    %288 = vmatpush1.msra.mxu0 %v276
    %289 = vmatprep.subr.mxu0 0.0
    %290 = vmatpush1.msra.mxu0 %v277
    %291 = vmatprep.subr.mxu0 0.0
    %292 = vmatpush1.msra.mxu0 %v278
    %293 = vmatprep.subr.mxu0 0.0
    %294 = vmatpush1.msra.mxu0 0.0
    %295 = vmatprep.subr.mxu0 0.0
    %296 = vmatpush1.msra.mxu0 0.0
    %297 = vmatprep.subr.mxu0 0.0
    %298 = vmatpush1.msra.mxu0 0.0
    %299 = vmatprep.subr.mxu0 0.0
    %300 = vmatpush1.msra.mxu0 0.0
    %301 = vmatprep.subr.mxu0 0.0
    %302 = vmatpush1.msra.mxu0 0.0
    %303 = vmatprep.subr.mxu0 0.0
    %304 = vmatpush1.msra.mxu0 0.0
    %305 = vmatprep.subr.mxu0 0.0
    %306 = vmatpush1.msra.mxu0 0.0
    %307 = vmatprep.subr.mxu0 0.0
    %308 = vmatpush1.msra.mxu0 0.0
    %309 = vmatprep.subr.mxu0 0.0
    %310 = vmatpush1.msra.mxu0 0.0
    %311 = vmatprep.subr.mxu0 0.0
    %312 = vmatpush1.msra.mxu0 0.0
    %313 = vmatprep.subr.mxu0 0.0
    %314 = vmatpush1.msra.mxu0 0.0
    %315 = vmatprep.subr.mxu0 0.0
    %316 = vmatpush1.msra.mxu0 0.0
    %317 = vmatprep.subr.mxu0 0.0
    %318 = vmatpush1.msra.mxu0 0.0
    %319 = vmatprep.subr.mxu0 0.0
    %320 = vmatpush1.msra.mxu0 0.0
    %321 = vmatprep.subr.mxu0 0.0
    %322 = vmatpush1.msra.mxu0 0.0
    %323 = vmatprep.subr.mxu0 0.0
    %324 = vmatpush1.msra.mxu0 0.0
    %325 = vmatprep.subr.mxu0 0.0
    %326 = vmatpush1.msra.mxu0 0.0
    %327 = vmatprep.subr.mxu0 0.0
    %328 = vmatpush1.msra.mxu0 0.0
    %329 = vmatprep.subr.mxu0 0.0
    %330 = vmatpush1.msra.mxu0 0.0
    %331 = vmatprep.subr.mxu0 0.0
    %332 = vmatpush1.msra.mxu0 0.0
    %333 = vmatprep.subr.mxu0 0.0
    %334 = vmatpush1.msra.mxu0 0.0
    %335 = vmatprep.subr.mxu0 0.0
    %336 = vmatpush1.msra.mxu0 0.0
    %337 = vmatprep.subr.mxu0 0.0
    %338 = vmatpush1.msra.mxu0 0.0
    %339 = vmatprep.subr.mxu0 0.0
    %340 = vmatpush1.msra.mxu0 0.0
    %341 = vmatprep.subr.mxu0 0.0
    %342 = vmatpush1.msra.mxu0 0.0
    %343 = vmatprep.subr.mxu0 0.0
    %344 = vmatpush1.msra.mxu0 0.0
    %345 = vmatprep.subr.mxu0 0.0
    %346 = vmatpush1.msra.mxu0 0.0
    %347 = vmatprep.subr.mxu0 0.0
    %348 = vmatpush1.msra.mxu0 0.0
    %349 = vmatprep.mubr.f32.mxu0 0.0
    %350 = vmatmul.mubr.f32.gmra.mrb[0].mxu0 %v283
    %v351 = vpop.f32.mrb[0].mxu0
    %v352 = vadd.f32 %v279, %v351
    %v353 = vpop.f32.mrb[0].mxu0
    %354 = vdwg.mxu0
    %vm355 = vcmask 64512
    %356 = vst.msk [vmem:[#allocation7] sm:$0xff] %vm355, %v352
    // Predicated region
    $region18: #{tpu_custom_call.1} parent=1 // pred_check
      _
    $region19: #{tpu_custom_call.1} parent=1 // pred_check_branch
      %358 = sbr.rel (0) target = $region21
    $region20: #{tpu_custom_call.1} parent=1 // pred_region
      %s360 = ssub.s32 128, 128
      %361 = vsyncadd [#allocation4], %s360
      %s363 = sshll.u32 [#allocation7], 4
      %s364 = int_to_ptr.vmem [resolvable:$true] %s363
      %366 = dma.vmem_to_hbm [thread:$0]  %s364, 128, %s2, [#allocation4]
    $region21: #{tpu_custom_call.1} parent=1 // pred_fallthru
      _
    // Predicated region
    $region22: #{tpu_custom_call.1} parent=1 // pred_check
      _
    $region23: #{tpu_custom_call.1} parent=1 // pred_check_branch
      %368 = sbr.rel (0) target = $region25
    $region24: #{tpu_custom_call.1} parent=1 // pred_region
      %369 = dma.done [#allocation4], 128
    $region25: #{tpu_custom_call.1} parent=1 // pred_fallthru
      _
    %370 = vsyncpa [#allocation3], 1
    %371 = vsyncpa [#allocation6], 1
    %372 = vsyncpa [#allocation4], 1

</llo_original>
